<compile_context>
chip_gen: v6e
topology: v6e:2x2x1
jax: 0.10.0
libtpu: 0.0.40
codegen_flags: <defaults>
</compile_context>

<pallas_src>
import functools

import jax
import jax.numpy as jnp
from jax.experimental import pallas as pl
from jax.experimental.pallas import tpu as pltpu

LANES = 128        # lane width of the streamed 2-D view
ACC_ROWS = 8       # one f32 vreg of sublanes -> fixed (8, 128) accumulators
TILE_ROWS = 4096   # rows per grid step -> 2 MiB f32 per input per buffer
NUM_CORES = 2      # leading parallel axis (2 TCs on v7x; serial split elsewhere)


def _dbn_reduce_kernel(pred_ref, tgt_ref, sse_ref, ssec_ref, *,
                       rows, tile_rows, tiles_per_core, needs_mask):
    """Streams (tile_rows, 128) blocks; accumulates per-core partial sums.

    sse_ref  (1, 8, 128)  accumulates (o - t)^2                (raw SSE)
    ssec_ref (1, 8, 128)  accumulates (clip(o,0,1) - t)^2      (clamped SSE for PSNR)
    Both outputs stay resident across the inner ("arbitrary") grid axis.
    """
    c = pl.program_id(0)
    i = pl.program_id(1)

    @pl.when(i == 0)
    def _():
        sse_ref[...] = jnp.zeros_like(sse_ref)
        ssec_ref[...] = jnp.zeros_like(ssec_ref)

    # Cast inside the kernel (free VPU work in an HBM-bound kernel); inputs are
    # streamed at their native dtype to keep HBM traffic minimal.
    o = pred_ref[...].astype(jnp.float32)
    t = tgt_ref[...].astype(jnp.float32)

    d = o - t
    dc = jnp.clip(o, 0.0, 1.0) - t
    sq = d * d
    sqc = dc * dc

    def fold(x):
        # (tile_rows, 128) -> (8, 128): vreg-aligned split of the sublane axis
        # plus a tree of VALU adds; keeps the accumulator one vreg wide.
        return x.reshape(tile_rows // ACC_ROWS, ACC_ROWS, LANES).sum(axis=0)

    def accumulate(a, b):
        sse_ref[...] += fold(a).reshape(sse_ref.shape)
        ssec_ref[...] += fold(b).reshape(ssec_ref.shape)

    if needs_mask:
        # Static decision: some tile of this launch is ragged (reads past the end
        # of the (rows,128) array) and/or a duplicate of the clamped last tile.
        # Keep the steady state unmasked; pay iota+compare+select only on tiles
        # at or beyond the first partially-valid global tile index.
        global_tile = c * tiles_per_core + i
        first_ragged = rows // tile_rows  # first global tile with invalid rows

        @pl.when(global_tile < first_ragged)
        def _():
            accumulate(sq, sqc)

        @pl.when(global_tile >= first_ragged)
        def _():
            row_idx = jax.lax.broadcasted_iota(jnp.int32, sq.shape, 0)
            valid = (global_tile * tile_rows + row_idx) < rows
            # Mask the *results* (true select) so garbage/NaN rows can't leak in.
            accumulate(jnp.where(valid, sq, 0.0), jnp.where(valid, sqc, 0.0))
    else:
        accumulate(sq, sqc)


def _pallas_partials(o2d, t2d, tile_rows):
    """Per-core partial sums of (o-t)^2 and (clip(o,0,1)-t)^2 over a (rows,128) view."""
    rows, lanes = o2d.shape
    assert lanes == LANES
    assert tile_rows % ACC_ROWS == 0 and tile_rows <= rows

    num_tiles = -(-rows // tile_rows)
    num_cores = min(NUM_CORES, num_tiles)
    tiles_per_core = -(-num_tiles // num_cores)
    needs_mask = (rows % tile_rows != 0) or (num_cores * tiles_per_core != num_tiles)

    kernel = functools.partial(
        _dbn_reduce_kernel, rows=rows, tile_rows=tile_rows,
        tiles_per_core=tiles_per_core, needs_mask=needs_mask)

    def in_map(c, i):
        # Clamp so duplicate tiles (grid rounded up to num_cores*tiles_per_core)
        # re-read the last valid tile instead of a fully out-of-bounds block;
        # their contribution is zeroed by the in-kernel mask.
        return (jnp.minimum(c * tiles_per_core + i, num_tiles - 1), 0)

    itemsize = o2d.dtype.itemsize
    bytes_accessed = (o2d.size + t2d.size) * itemsize \
        + 2 * num_cores * ACC_ROWS * LANES * 4
    flops = 8 * rows * LANES

    return pl.pallas_call(
        kernel,
        out_shape=(
            jax.ShapeDtypeStruct((num_cores, ACC_ROWS, LANES), jnp.float32),
            jax.ShapeDtypeStruct((num_cores, ACC_ROWS, LANES), jnp.float32),
        ),
        grid_spec=pltpu.PrefetchScalarGridSpec(
            num_scalar_prefetch=0,
            grid=(num_cores, tiles_per_core),
            in_specs=[
                pl.BlockSpec((tile_rows, LANES), in_map),
                pl.BlockSpec((tile_rows, LANES), in_map),
            ],
            out_specs=[
                pl.BlockSpec((1, ACC_ROWS, LANES), lambda c, i: (c, 0, 0)),
                pl.BlockSpec((1, ACC_ROWS, LANES), lambda c, i: (c, 0, 0)),
            ],
        ),
        compiler_params=pltpu.CompilerParams(
            dimension_semantics=("parallel", "arbitrary"),
            vmem_limit_bytes=48 * 1024 * 1024,
        ),
        cost_estimate=pl.CostEstimate(
            flops=flops, transcendentals=0, bytes_accessed=bytes_accessed),
    )(o2d, t2d)


def _dbn_sums(output, target, tile_rows=TILE_ROWS):
    """Returns (sum((o-t)^2), sum((clip(o,0,1)-t)^2)) as f32 scalars."""
    assert output.shape == target.shape
    n = output.size
    fo = output.reshape(-1)
    ft = target.reshape(-1)

    def jnp_sums(o, t):
        o = o.astype(jnp.float32)
        t = t.astype(jnp.float32)
        d = o - t
        dc = jnp.clip(o, 0.0, 1.0) - t
        return jnp.sum(d * d), jnp.sum(dc * dc)

    rows = n // LANES
    rem = n - rows * LANES

    if rows < ACC_ROWS:
        # Tiny input (< 1024 elements): not worth a kernel launch.
        return jnp_sums(fo, ft)

    if rem:
        # < 128-element lane remainder: reduce with plain jnp (no full-array pad).
        tail_sse, tail_ssec = jnp_sums(fo[n - rem:], ft[n - rem:])
        # TODO(synk): this prefix slice still materializes one copy of the bulk
        # data when n % 128 != 0; a fully copy-free path would need a manual-DMA
        # (memory_space=pl.ANY) variant of the kernel.
        mo, mt = fo[: n - rem], ft[: n - rem]
    else:
        tail_sse = tail_ssec = jnp.float32(0.0)
        mo, mt = fo, ft  # pure metadata reshape below, zero-copy

    o2d = mo.reshape(rows, LANES)
    t2d = mt.reshape(rows, LANES)

    tile_rows = min(tile_rows, (rows // ACC_ROWS) * ACC_ROWS)
    p_sse, p_ssec = _pallas_partials(o2d, t2d, tile_rows)

    # Combine the per-core (num_cores, 8, 128) partials: tiny reduction.
    return jnp.sum(p_sse) + tail_sse, jnp.sum(p_ssec) + tail_ssec


def dbn_loss(output, target, training=True):
    """JAX equivalent of DBNLoss.forward.

    output, target: NCHW arrays of identical shape.
    Returns {'total_loss': scalar, 'psnr': scalar}.
    """
    n = jnp.float32(output.size)
    sse, sse_clamp = _dbn_sums(output, target)

    total_loss = 0.5 * sse

    if training:
        # train_psnr: PSNR(scale_opt=False, trans_opt=False) on clamped output.
        mse_mean = sse_clamp / n
    else:
        # TODO(synk): valid_psnr uses scale/translation-optimized PSNR; that PSNR
        # class is not defined in the reference, so plain PSNR on the raw output
        # is used here.
        mse_mean = sse / n

    # 1/0 -> inf -> log10(inf) = inf, matching the reference when output == target.
    psnr = 10.0 * jnp.log10(1.0 / mse_mean)

    return {"total_loss": total_loss, "psnr": psnr}


def _check(output, target, tile_rows=TILE_ROWS):
    sse, ssec = _dbn_sums(output, target, tile_rows=tile_rows)
    jax.block_until_ready(sse)
    o32 = output.astype(jnp.float32)
    t32 = target.astype(jnp.float32)
    ref_sse = jnp.sum((o32 - t32) ** 2)
    ref_ssec = jnp.sum((jnp.clip(o32, 0.0, 1.0) - t32) ** 2)
    assert jnp.allclose(sse, ref_sse, rtol=1e-5, atol=1e-4), (sse, ref_sse)
    assert jnp.allclose(ssec, ref_ssec, rtol=1e-5, atol=1e-4), (ssec, ref_ssec)


if __name__ == "__main__":
    key = jax.random.PRNGKey(0)
    k1, k2, k3, k4, k5, k6 = jax.random.split(key, 6)

    # Primary test: shapes consistent with the module (NCHW).
    B, C, H, W = 2, 4, 16, 16
    output = jax.random.uniform(k1, (B, C, H, W), dtype=jnp.float32,
                                minval=-0.2, maxval=1.2)
    target = jax.random.uniform(k2, (B, C, H, W), dtype=jnp.float32,
                                minval=0.0, maxval=1.0)

    result = dbn_loss(output, target, training=True)
    jax.block_until_ready(result["total_loss"])
    jax.block_until_ready(result["psnr"])

    ref_loss = 0.5 * jnp.sum((output - target) ** 2)
    ref_mse = jnp.mean((jnp.clip(output, 0.0, 1.0) - target) ** 2)
    ref_psnr = 10.0 * jnp.log10(1.0 / ref_mse)
    assert jnp.allclose(result["total_loss"], ref_loss, rtol=1e-5, atol=1e-4), (
        result["total_loss"], ref_loss)
    assert jnp.allclose(result["psnr"], ref_psnr, rtol=1e-5, atol=1e-4), (
        result["psnr"], ref_psnr)

    # Non-multiple-of-128 element count: exercises the jnp lane-tail path plus a
    # two-core grid with a masked ragged tile (rows=18, tile_rows=16).
    o2 = jax.random.uniform(k3, (2, 3, 20, 20), dtype=jnp.float32,
                            minval=-0.3, maxval=1.3)
    t2 = jax.random.uniform(k4, (2, 3, 20, 20), dtype=jnp.float32,
                            minval=0.0, maxval=1.0)
    _check(o2, t2)

    # Multi-tile-per-core path with a ragged last tile AND a duplicate (clamped)
    # tile: rows=40, tile_rows=16 -> 3 real tiles over a (2, 2) grid.
    o3 = jax.random.uniform(k5, (1, 2, 20, 128), dtype=jnp.float32,
                            minval=-0.3, maxval=1.3)
    t3 = jax.random.uniform(k6, (1, 2, 20, 128), dtype=jnp.float32,
                            minval=0.0, maxval=1.0)
    _check(o3, t3, tile_rows=16)

    print("KERNEL_OK")
</pallas_src>

<mosaic_0001>
module attributes {stable_mosaic.version = 11 : i64} {
  func.func @_dbn_reduce_kernel(%arg0: i32, %arg1: i32, %arg2: memref<16x128xf32, #tpu.memory_space<vmem>>, %arg3: memref<16x128xf32, #tpu.memory_space<vmem>>, %arg4: memref<1x8x128xf32, #tpu.memory_space<vmem>>, %arg5: memref<1x8x128xf32, #tpu.memory_space<vmem>>) attributes {dimension_semantics = [#tpu.dimension_semantics<parallel>, #tpu.dimension_semantics<arbitrary>], iteration_bounds = array<i64: 1, 1>, scalar_prefetch = 0 : i64, scratch_operands = 0 : i64, tpu.core_type = #tpu.core_type<tc>, window_params = [{transform_indices = @transform_0, window_bounds = array<i64: 16, 128>}, {transform_indices = @transform_1, window_bounds = array<i64: 16, 128>}, {transform_indices = @transform_2, window_bounds = array<i64: 1, 8, 128>}, {transform_indices = @transform_3, window_bounds = array<i64: 1, 8, 128>}]} {
    %c0_i32 = arith.constant 0 : i32
    %0 = arith.cmpi eq, %arg1, %c0_i32 : i32
    %1 = arith.extui %0 : i1 to i32
    %c0_i32_0 = arith.constant 0 : i32
    %2 = arith.cmpi ne, %1, %c0_i32_0 : i32
    scf.if %2 {
      %cst_19 = arith.constant 0.000000e+00 : f32
      %25 = vector.broadcast %cst_19 : f32 to vector<1x8x128xf32>
      %c0_20 = arith.constant 0 : index
      %c0_21 = arith.constant 0 : index
      %c0_22 = arith.constant 0 : index
      %26 = vector.load %arg4[%c0_20, %c0_21, %c0_22] : memref<1x8x128xf32, #tpu.memory_space<vmem>>, vector<1x8x128xf32>
      tpu.vector_store %arg4[%c0_20, %c0_21, %c0_22], %25 {strides = array<i32>} : memref<1x8x128xf32, #tpu.memory_space<vmem>>, vector<1x8x128xf32>,
      %cst_23 = arith.constant 0.000000e+00 : f32
      %27 = vector.broadcast %cst_23 : f32 to vector<1x8x128xf32>
      %c0_24 = arith.constant 0 : index
      %c0_25 = arith.constant 0 : index
      %c0_26 = arith.constant 0 : index
      %28 = vector.load %arg5[%c0_24, %c0_25, %c0_26] : memref<1x8x128xf32, #tpu.memory_space<vmem>>, vector<1x8x128xf32>
      tpu.vector_store %arg5[%c0_24, %c0_25, %c0_26], %27 {strides = array<i32>} : memref<1x8x128xf32, #tpu.memory_space<vmem>>, vector<1x8x128xf32>,
    } else {
    }
    %c0 = arith.constant 0 : index
    %c0_1 = arith.constant 0 : index
    %3 = vector.load %arg2[%c0, %c0_1] : memref<16x128xf32, #tpu.memory_space<vmem>>, vector<16x128xf32>
    %c0_2 = arith.constant 0 : index
    %c0_3 = arith.constant 0 : index
    %4 = vector.load %arg3[%c0_2, %c0_3] : memref<16x128xf32, #tpu.memory_space<vmem>>, vector<16x128xf32>
    %5 = arith.subf %3, %4 : vector<16x128xf32>
    %cst = arith.constant 0.000000e+00 : f32
    %cst_4 = arith.constant 1.000000e+00 : f32
    %6 = vector.broadcast %cst : f32 to vector<16x128xf32>
    %7 = arith.maximumf %6, %3 : vector<16x128xf32>
    %8 = vector.broadcast %cst_4 : f32 to vector<16x128xf32>
    %9 = arith.minimumf %8, %7 : vector<16x128xf32>
    %10 = arith.subf %9, %4 : vector<16x128xf32>
    %11 = arith.mulf %5, %5 : vector<16x128xf32>
    %12 = arith.mulf %10, %10 : vector<16x128xf32>
    %c0_5 = arith.constant 0 : index
    %c0_6 = arith.constant 0 : index
    %c0_7 = arith.constant 0 : index
    %13 = vector.load %arg4[%c0_5, %c0_6, %c0_7] : memref<1x8x128xf32, #tpu.memory_space<vmem>>, vector<1x8x128xf32>
    %14 = vector.shape_cast %11 : vector<16x128xf32> to vector<2x8x128xf32>
    %cst_8 = arith.constant dense<0.000000e+00> : vector<8x128xf32>
    %15 = vector.multi_reduction <add>, %14, %cst_8 [0] : vector<2x8x128xf32> to vector<8x128xf32>
    %16 = vector.shape_cast %15 : vector<8x128xf32> to vector<1x8x128xf32>
    %17 = arith.addf %13, %16 : vector<1x8x128xf32>
    %c0_9 = arith.constant 0 : index
    %c0_10 = arith.constant 0 : index
    %c0_11 = arith.constant 0 : index
    %18 = vector.load %arg4[%c0_9, %c0_10, %c0_11] : memref<1x8x128xf32, #tpu.memory_space<vmem>>, vector<1x8x128xf32>
    tpu.vector_store %arg4[%c0_9, %c0_10, %c0_11], %17 {strides = array<i32>} : memref<1x8x128xf32, #tpu.memory_space<vmem>>, vector<1x8x128xf32>,
    %c0_12 = arith.constant 0 : index
    %c0_13 = arith.constant 0 : index
    %c0_14 = arith.constant 0 : index
    %19 = vector.load %arg5[%c0_12, %c0_13, %c0_14] : memref<1x8x128xf32, #tpu.memory_space<vmem>>, vector<1x8x128xf32>
    %20 = vector.shape_cast %12 : vector<16x128xf32> to vector<2x8x128xf32>
    %cst_15 = arith.constant dense<0.000000e+00> : vector<8x128xf32>
    %21 = vector.multi_reduction <add>, %20, %cst_15 [0] : vector<2x8x128xf32> to vector<8x128xf32>
    %22 = vector.shape_cast %21 : vector<8x128xf32> to vector<1x8x128xf32>
    %23 = arith.addf %19, %22 : vector<1x8x128xf32>
    %c0_16 = arith.constant 0 : index
    %c0_17 = arith.constant 0 : index
    %c0_18 = arith.constant 0 : index
    %24 = vector.load %arg5[%c0_16, %c0_17, %c0_18] : memref<1x8x128xf32, #tpu.memory_space<vmem>>, vector<1x8x128xf32>
    tpu.vector_store %arg5[%c0_16, %c0_17, %c0_18], %23 {strides = array<i32>} : memref<1x8x128xf32, #tpu.memory_space<vmem>>, vector<1x8x128xf32>,
    return
  }
  func.func @transform_0(%arg0: i32, %arg1: i32) -> (i32, i32) {
    %c1_i32 = arith.constant 1 : i32
    %0 = arith.muli %arg0, %c1_i32 : i32
    %1 = arith.addi %0, %arg1 : i32
    %c0_i32 = arith.constant 0 : i32
    %2 = arith.minsi %1, %c0_i32 : i32
    %c0_i32_0 = arith.constant 0 : i32
    %c0_i32_1 = arith.constant 0 : i32
    return %2, %c0_i32_0 : i32, i32
  }
  func.func @transform_1(%arg0: i32, %arg1: i32) -> (i32, i32) {
    %c1_i32 = arith.constant 1 : i32
    %0 = arith.muli %arg0, %c1_i32 : i32
    %1 = arith.addi %0, %arg1 : i32
    %c0_i32 = arith.constant 0 : i32
    %2 = arith.minsi %1, %c0_i32 : i32
    %c0_i32_0 = arith.constant 0 : i32
    %c0_i32_1 = arith.constant 0 : i32
    return %2, %c0_i32_0 : i32, i32
  }
  func.func @transform_2(%arg0: i32, %arg1: i32) -> (i32, i32, i32) {
    %c0_i32 = arith.constant 0 : i32
    %c0_i32_0 = arith.constant 0 : i32
    %c0_i32_1 = arith.constant 0 : i32
    return %arg0, %c0_i32, %c0_i32_0 : i32, i32, i32
  }
  func.func @transform_3(%arg0: i32, %arg1: i32) -> (i32, i32, i32) {
    %c0_i32 = arith.constant 0 : i32
    %c0_i32_0 = arith.constant 0 : i32
    %c0_i32_1 = arith.constant 0 : i32
    return %arg0, %c0_i32, %c0_i32_0 : i32, i32, i32
  }
}

</mosaic_0001>

<llo_original>
// kernel: tpu_custom_call.1
$region0: #{tpu_custom_call.1}
  #allocation0 [shape = 'u32[]', space=smem, size = 0x4, offset = 0x4, fixed_abs, tag = 'smem constant byte address 0x4 - core index']
  #allocation1 [shape = 'u32[144,128]{1,0:T(1,128)}', space=vmem, size = 0x12000, scoped, tag = 'internal scratch']
  %s0 = inlined_call_operand.hbm [shape: f32[16,128], index: 0, kind: input, shape index: {}]
  %s1 = inlined_call_operand.hbm [shape: f32[16,128], index: 1, kind: input, shape index: {}]
  %s2 = inlined_call_operand.hbm [shape: f32[1,8,128], index: 2, kind: output, shape index: {0}]
  %s3 = inlined_call_operand.hbm [shape: f32[1,8,128], index: 3, kind: output, shape index: {1}]
  %4 = xla_tuple %s2, %s3
  %s5 = sld [smem:[#allocation0]]
  $region38: #{tpu_custom_call.1} parent=0
    _
  %s7 = ssub.s32 1, %s5
  %s8 = scalar_select 0, %s7, %s5
  $region1: #{tpu_custom_call.1} parent=0
    #allocation2 [shape = 'u8[8192]{0}', space=vmem, size = 0x2000, scoped, tag = 'input window, operand 0, single buffered']
    #allocation3 [shape = 's32[1]{0}', space=sflag, size = 0x4, scoped, tag = 'scoped memory for tpu_custom_call.1']
    #allocation4 [shape = 's32[1]{0}', space=sflag, size = 0x4, scoped, tag = 'scoped memory for tpu_custom_call.1']
    #allocation5 [shape = 'u8[8192]{0}', space=vmem, size = 0x2000, scoped, tag = 'input window, operand 1, single buffered']
    #allocation6 [shape = 's32[1]{0}', space=sflag, size = 0x4, scoped, tag = 'scoped memory for tpu_custom_call.1']
    #allocation7 [shape = 'u8[4096]{0}', space=vmem, size = 0x1000, scoped, tag = 'output window, operand 0, single buffered']
    #allocation8 [shape = 'u8[4096]{0}', space=vmem, size = 0x1000, scoped, tag = 'output window, operand 1, single buffered']
    #allocation9 [shape = 's32[1]{0}', space=sflag, size = 0x4, scoped, tag = 'scoped memory for tpu_custom_call.1']
    %9 = vsyncpa [#allocation3], 0
    %10 = vsyncpa [#allocation6], 0
    %11 = vsyncpa [#allocation4], 0
    %12 = vsyncpa [#allocation9], 0
    // Predicated region
    $region2: #{tpu_custom_call.1} parent=1 // pred_check
      _
    $region3: #{tpu_custom_call.1} parent=1 // pred_check_branch
      %14 = sbr.rel (0) target = $region5
    $region4: #{tpu_custom_call.1} parent=1 // pred_region
      %s15 = sadd.s32 0, 0
      %p16 = scmp.lt.s32.totalorder %s15, 0
      %s17 = scalar_select %p16, %s15, 0
      %s18 = smul.u32 2, %s17
      %s20 = ssub.s32 256, 256
      %21 = vsyncadd [#allocation3], %s20
      %s22 = smul.addr %s18, 128
      %s23 = scalar_lea.hbm %s0, %s22
      %s24 = sshll.u32 [#allocation2], 4
      %s25 = int_to_ptr.vmem [resolvable:$true] %s24
      %30 = dma.hbm_to_vmem [thread:$0]  %s23, 256, %s25, [#allocation3], 128, 128, 8
    $region5: #{tpu_custom_call.1} parent=1 // pred_fallthru
      _
    // Predicated region
    $region6: #{tpu_custom_call.1} parent=1 // pred_check
      _
    $region7: #{tpu_custom_call.1} parent=1 // pred_check_branch
      %32 = sbr.rel (0) target = $region9
    $region8: #{tpu_custom_call.1} parent=1 // pred_region
      %s33 = sadd.s32 0, 0
      %p34 = scmp.lt.s32.totalorder %s33, 0
      %s35 = scalar_select %p34, %s33, 0
      %s36 = smul.u32 2, %s35
      %s38 = ssub.s32 256, 256
      %39 = vsyncadd [#allocation6], %s38
      %s40 = smul.addr %s36, 128
      %s41 = scalar_lea.hbm %s1, %s40
      %s42 = sshll.u32 [#allocation5], 4
      %s43 = int_to_ptr.vmem [resolvable:$true] %s42
      %48 = dma.hbm_to_vmem [thread:$0]  %s41, 256, %s43, [#allocation6], 128, 128, 8
    $region9: #{tpu_custom_call.1} parent=1 // pred_fallthru
      _
    // Predicated region
    $region10: #{tpu_custom_call.1} parent=1 // pred_check
      _
    $region11: #{tpu_custom_call.1} parent=1 // pred_check_branch
      %50 = sbr.rel (0) target = $region13
    $region12: #{tpu_custom_call.1} parent=1 // pred_region
      %51 = dma.done [#allocation3], 256
    $region13: #{tpu_custom_call.1} parent=1 // pred_fallthru
      _
    // Predicated region
    $region14: #{tpu_custom_call.1} parent=1 // pred_check
      _
    $region15: #{tpu_custom_call.1} parent=1 // pred_check_branch
      %53 = sbr.rel (0) target = $region17
    $region16: #{tpu_custom_call.1} parent=1 // pred_region
      %54 = dma.done [#allocation6], 256
    $region17: #{tpu_custom_call.1} parent=1 // pred_fallthru
      _
    %s55 = sadd.s32 0, 0
    %p56 = scmp.lt.s32.totalorder %s55, 0
    %s57 = scalar_select %p56, %s55, 0
    %s58 = smul.u32 2, %s57
    %s59 = sadd.s32 0, 0
    %p60 = scmp.lt.s32.totalorder %s59, 0
    %s61 = scalar_select %p60, %s59, 0
    %s62 = smul.u32 2, %s61
    %p63 = scmp.eq.s32.totalorder 0, 0
    // Predicated region
    $region18: #{tpu_custom_call.1} parent=1 // pred_check
      %p64 = pneg %p63
    $region19: #{tpu_custom_call.1} parent=1 // pred_check_branch
      %66 = sbr.rel (%p64) target = $region21
    $region20: #{tpu_custom_call.1} parent=1 // pred_region
      %67 = vst [vmem:[#allocation7] sm:$0xff] 0.0
      %68 = vst [vmem:[#allocation8] sm:$0xff] 0.0
    $region21: #{tpu_custom_call.1} parent=1 // pred_fallthru
      _
    %v69 = vld [vmem:[#allocation2] sm:$0xff]
    %v70 = vld [vmem:[#allocation2 + $0x8] sm:$0xff]
    %v71 = vld [vmem:[#allocation5] sm:$0xff]
    %v72 = vld [vmem:[#allocation5 + $0x8] sm:$0xff]
    %v73 = vsub.f32 %v69, %v71
    %v74 = vsub.f32 %v70, %v72
    %v75 = vmax.f32 %v69, 0.0
    %v76 = vmax.f32 %v70, 0.0
    %v77 = vmin.f32 %v75, 1.0
    %v78 = vmin.f32 %v76, 1.0
    %v79 = vsub.f32 %v77, %v71
    %v80 = vsub.f32 %v78, %v72
    %v81 = vmul.f32 %v73, %v73
    %v82 = vmul.f32 %v74, %v74
    %v83 = vmul.f32 %v79, %v79
    %v84 = vmul.f32 %v80, %v80
    %v85 = vld [vmem:[#allocation7] sm:$0xff]
    %v86 = vadd.f32 %v81, %v82
    %v87 = vadd.f32 %v85, %v86
    %88 = vst [vmem:[#allocation7] sm:$0xff] %v87
    %v89 = vld [vmem:[#allocation8] sm:$0xff]
    %v90 = vadd.f32 %v83, %v84
    %v91 = vadd.f32 %v89, %v90
    %92 = vst [vmem:[#allocation8] sm:$0xff] %v91
    // Predicated region
    $region22: #{tpu_custom_call.1} parent=1 // pred_check
      _
    $region23: #{tpu_custom_call.1} parent=1 // pred_check_branch
      %94 = sbr.rel (0) target = $region25
    $region24: #{tpu_custom_call.1} parent=1 // pred_region
      %s96 = ssub.s32 128, 128
      %97 = vsyncadd [#allocation4], %s96
      %s99 = sshll.u32 [#allocation7], 4
      %s100 = int_to_ptr.vmem [resolvable:$true] %s99
      %102 = dma.vmem_to_hbm [thread:$0]  %s100, 128, %s2, [#allocation4]
    $region25: #{tpu_custom_call.1} parent=1 // pred_fallthru
      _
    // Predicated region
    $region26: #{tpu_custom_call.1} parent=1 // pred_check
      _
    $region27: #{tpu_custom_call.1} parent=1 // pred_check_branch
      %104 = sbr.rel (0) target = $region29
    $region28: #{tpu_custom_call.1} parent=1 // pred_region
      %s106 = ssub.s32 128, 128
      %107 = vsyncadd [#allocation9], %s106
      %s109 = sshll.u32 [#allocation8], 4
      %s110 = int_to_ptr.vmem [resolvable:$true] %s109
      %112 = dma.vmem_to_hbm [thread:$0]  %s110, 128, %s3, [#allocation9]
    $region29: #{tpu_custom_call.1} parent=1 // pred_fallthru
      _
    // Predicated region
    $region30: #{tpu_custom_call.1} parent=1 // pred_check
      _
    $region31: #{tpu_custom_call.1} parent=1 // pred_check_branch
      %114 = sbr.rel (0) target = $region33
    $region32: #{tpu_custom_call.1} parent=1 // pred_region
      %115 = dma.done [#allocation4], 128
    $region33: #{tpu_custom_call.1} parent=1 // pred_fallthru
      _
    // Predicated region
    $region34: #{tpu_custom_call.1} parent=1 // pred_check
      _
    $region35: #{tpu_custom_call.1} parent=1 // pred_check_branch
      %117 = sbr.rel (0) target = $region37
    $region36: #{tpu_custom_call.1} parent=1 // pred_region
      %118 = dma.done [#allocation9], 128
    $region37: #{tpu_custom_call.1} parent=1 // pred_fallthru
      _
    %119 = vsyncpa [#allocation3], 1
    %120 = vsyncpa [#allocation6], 1
    %121 = vsyncpa [#allocation4], 1
    %122 = vsyncpa [#allocation9], 1

</llo_original>
